<compile_context>
chip_gen: v7x
topology: tpu7x:2x2x1
jax: 0.10.0
libtpu: 0.0.40
codegen_flags: <defaults>
</compile_context>

<pallas_src>
import jax
import jax.numpy as jnp
from jax.experimental import pallas as pl
from jax.experimental.pallas import tpu as pltpu

# ---------------- model configuration (small, consistent with the module) ----
BATCH = 32
B_TILE = 8              # batch tile; B_TILE * EMBED_SIZE = 256 lanes per tile
NUM_FIELDS = 8          # F
EMBED_SIZE = 32         # D
HIDDEN_SIZE = 64
NUM_HIDDEN_LAYERS = 3   # DNN depth (module default is 6; kept small)
CIN_UNITS = (8, 8, 8)   # module default '25-25-25'; kept small & sublane-aligned
INPUT_SIZE = 100        # vocab size for the embedding table
OUT_DIM = 1
FINAL_DIM = sum(CIN_UNITS) + HIDDEN_SIZE
# TODO(synk): CIN units that are not multiples of 8 (e.g. the original 25-25-25)
# need sublane padding of the had/(U,·) tiles; handled only for multiples of 8.


# ------------------------------- Pallas kernel -------------------------------
def xdeepfm_kernel(x0t_ref, xflat_ref, poolT_ref, cinw_ref, dnnw_ref, misc_ref,
                   out_ref):
    """One grid step == one batch tile of B_TILE examples.

    x0t_ref   : (F, B_TILE*D)          embeddings, field rows, (ex, dim) on lanes
    xflat_ref : (B_TILE, F*D)          embeddings flattened per example (DNN)
    poolT_ref : (B_TILE, B_TILE*D)     0/1 per-example sum-pool selector
    cinw_ref  : (sum(U), F*U_prev)     bf16, stacked CIN Conv1d(k=1) weights
    dnnw_ref  : (F*D + 2*H, H)         bf16, stacked DNN weights (pre-transposed)
    misc_ref  : (16, 128) f32 slab:
                  rows 0..2  lanes :H   -> dnn biases b0,b1,b2
                  row  3     lanes :H   -> fc_out weight slice for the DNN part
                  row  7     lane  0    -> fc_out bias
                  rows 8..15 col l      -> CIN bias of layer l   (l = 0,1,2)
                  rows 8..15 col 3+l    -> fc_out slice for CIN layer l
    out_ref   : (B_TILE, 1)            sigmoid(logit) column for this tile
    """
    F, D, H = NUM_FIELDS, EMBED_SIZE, HIDDEN_SIZE
    bt = out_ref.shape[0]
    btd = bt * D

    x0 = x0t_ref[...]                       # (F, bt*D)   f32
    pool_t = poolT_ref[...]                 # (bt, bt*D)  f32
    cin_w = cinw_ref[...]                   # bf16
    misc = misc_ref[...]                    # f32

    # ---- CIN: one bf16 MXU matmul per layer, fc_out folded before pooling ---
    fc_acc = jnp.zeros((1, btd), dtype=jnp.float32)
    xi = x0                                 # (U_prev, bt*D), starts as (F, bt*D)
    row = 0
    for l, u in enumerate(CIN_UNITS):
        h_prev = xi.shape[0]
        # had[f*H + m, b*D + d] = x0[b, f, d] * xi[b, m, d]  (field-major, matches
        # the PyTorch einsum("bhd,bmd->bhmd").view(B, F*H, D) ordering)
        had = (x0[:, None, :] * xi[None, :, :]).reshape(F * h_prev, btd)   # f32
        cw = cin_w[row:row + u, :F * h_prev]                               # bf16
        z = jnp.dot(cw, had.astype(jnp.bfloat16),
                    preferred_element_type=jnp.float32)                    # (u, bt*D)
        cb = misc[8:8 + u, l:l + 1]                                        # (u, 1)
        xi = jnp.maximum(z + cb, 0.0)                                      # f32
        # fold fc_out slice for this layer BEFORE pooling (linear, order-free)
        fw_col = misc[8:8 + u, 3 + l:4 + l]                                # (u, 1)
        fc_acc = fc_acc + jnp.sum(xi * fw_col, axis=0, keepdims=True)      # (1, bt*D)
        row += u
    # single per-example sum-pool at the end: (bt, bt*D)*(1, bt*D) -> (bt, 1)
    cin_col = jnp.sum(pool_t * fc_acc, axis=1, keepdims=True)

    # ---- DNN tower: bf16 MXU matmuls, f32 accumulation (dropout = identity) --
    dnn_w = dnnw_ref[...]                                                  # bf16
    h = xflat_ref[...]                                                     # (bt, F*D)
    off, in_dim = 0, F * D
    for i in range(NUM_HIDDEN_LAYERS):
        wt = dnn_w[off:off + in_dim, :]                                    # (in, H)
        b_row = misc[i:i + 1, 0:H]                                         # (1, H)
        h = jnp.maximum(
            jnp.dot(h.astype(jnp.bfloat16), wt,
                    preferred_element_type=jnp.float32) + b_row, 0.0)      # (bt, H)
        off, in_dim = off + in_dim, H
    # fc_out contribution of the DNN part, no transpose: lane reduction -> column
    fwd_row = misc[3:4, 0:H]                                               # (1, H)
    dnn_col = jnp.sum(h * fwd_row, axis=1, keepdims=True)                  # (bt, 1)

    fc_b = misc[7:8, 0:1]                                                  # (1, 1)
    out_ref[...] = jax.nn.sigmoid(cin_col + dnn_col + fc_b)


# ------------------------------ weight packing --------------------------------
def pack_params(p):
    """Pack all weights/biases into 3 lane-dense slabs (bf16 weights, f32 misc)."""
    F, D, H = NUM_FIELDS, EMBED_SIZE, HIDDEN_SIZE
    # CIN weights: all (u, F*u_prev) are (8, 64) for this config -> stack rows.
    cin_slab = jnp.concatenate(
        [p[f'cin_w{i + 1}'] for i in range(len(CIN_UNITS))], axis=0
    ).astype(jnp.bfloat16)                                    # (24, 64)
    # DNN weights pre-transposed to (in, out) and stacked along rows.
    dnn_slab = jnp.concatenate(
        [p[f'dnn_w{i}'].T for i in range(NUM_HIDDEN_LAYERS)], axis=0
    ).astype(jnp.bfloat16)                                    # (F*D + 2H, H)
    # Misc slab (f32, exact): biases + fc_out slices + fc_out bias.
    misc = jnp.zeros((16, 128), jnp.float32)
    for i in range(NUM_HIDDEN_LAYERS):
        misc = misc.at[i, :H].set(p[f'dnn_b{i}'][:, 0])
    u_off = 0
    fc_w = p['fc_w'][0]                                       # (FINAL_DIM,)
    for l, u in enumerate(CIN_UNITS):
        misc = misc.at[8:8 + u, l].set(p[f'cin_b{l + 1}'][:, 0])        # CIN bias
        misc = misc.at[8:8 + u, 3 + l].set(fc_w[u_off:u_off + u])       # fc slice
        u_off += u
    misc = misc.at[3, :H].set(fc_w[u_off:u_off + H])          # fc slice for DNN
    misc = misc.at[7, 0].set(p['fc_b'][0, 0])                 # fc bias
    return cin_slab, dnn_slab, misc


# ------------------------------- wrapper --------------------------------------
def xdeepfm_forward(input_ids, p):
    # Embedding lookup (gather) is glue in plain JAX; dropout is identity (eval).
    emb = p['embed'][input_ids].astype(jnp.float32)            # (B, F, D)
    B, F, D = emb.shape
    assert B % B_TILE == 0

    # Two lane-dense layouts of the embeddings (host-side layout plumbing).
    x0t = emb.transpose(1, 0, 2).reshape(F, B * D)             # CIN layout
    xflat = emb.reshape(B, F * D)                              # DNN layout

    # Pre-materialized per-example sum-pool selector: poolT[b, b'*D+d] = (b==b')
    row_id = jax.lax.broadcasted_iota(jnp.int32, (B_TILE, B_TILE * D), 0)
    col_blk = jax.lax.broadcasted_iota(jnp.int32, (B_TILE, B_TILE * D), 1) // D
    pool_t = (row_id == col_blk).astype(jnp.float32)           # (B_TILE, B_TILE*D)

    cin_slab, dnn_slab, misc = pack_params(p)

    def const_spec(shape):
        zeros = (0,) * len(shape)
        return pl.BlockSpec(tuple(shape), lambda i, _z=zeros: _z)

    in_specs = [
        pl.BlockSpec((F, B_TILE * D), lambda i: (0, i)),       # x0t batch tile (lanes)
        pl.BlockSpec((B_TILE, F * D), lambda i: (i, 0)),       # xflat batch tile (rows)
        const_spec(pool_t.shape),                              # resident constants
        const_spec(cin_slab.shape),
        const_spec(dnn_slab.shape),
        const_spec(misc.shape),
    ]
    out_spec = pl.BlockSpec((B_TILE, 1), lambda i: (i, 0))

    out = pl.pallas_call(
        xdeepfm_kernel,
        out_shape=jax.ShapeDtypeStruct((B, 1), jnp.float32),
        grid_spec=pltpu.PrefetchScalarGridSpec(
            num_scalar_prefetch=0,
            grid=(B // B_TILE,),                               # one step per batch tile
            in_specs=in_specs,
            out_specs=out_spec,
        ),
        compiler_params=pltpu.CompilerParams(
            dimension_semantics=("parallel",),                 # megacore-ready on v7x
            vmem_limit_bytes=32 * 1024 * 1024,                 # explicit (v5e default 16MiB)
        ),
    )(x0t, xflat, pool_t, cin_slab, dnn_slab, misc)

    return out[:, 0]                                           # logits.squeeze() -> (B,)


# ------------------------ pure-JAX reference (for checking) ------------------
def xdeepfm_ref(input_ids, p):
    with jax.default_matmul_precision("highest"):
        x0 = p['embed'][input_ids].astype(jnp.float32)         # (B, F, D)
        B, F, D = x0.shape
        xi = x0
        pooled = []
        for i in range(1, len(CIN_UNITS) + 1):
            H = xi.shape[1]
            had = jnp.einsum('bhd,bmd->bhmd', x0, xi).reshape(B, F * H, D)
            w = p[f'cin_w{i}']                                 # (U, F*H)
            b = p[f'cin_b{i}']                                 # (U, 1)
            z = jnp.einsum('uc,bcd->bud', w, had) + b[None, :, :]
            xi = jax.nn.relu(z)
            pooled.append(jnp.sum(xi, axis=-1))
        cin_out = jnp.concatenate(pooled, axis=-1)             # (B, sum(U))
        h = x0.reshape(B, F * D)
        for i in range(NUM_HIDDEN_LAYERS):
            h = jax.nn.relu(h @ p[f'dnn_w{i}'].T + p[f'dnn_b{i}'][:, 0])
        final_vec = jnp.concatenate([cin_out, h], axis=-1)
        logit = final_vec @ p['fc_w'].T + p['fc_b'][:, 0]
        return jax.nn.sigmoid(logit[:, 0])                     # (B,)


# ------------------------------- parameters -----------------------------------
def init_params(key):
    keys = iter(jax.random.split(key, 32))
    p = {}
    p['embed'] = 0.1 * jax.random.normal(next(keys), (INPUT_SIZE, EMBED_SIZE),
                                         jnp.float32)
    prev = NUM_FIELDS
    for i, u in enumerate(CIN_UNITS):
        p[f'cin_w{i+1}'] = 0.1 * jax.random.normal(
            next(keys), (u, NUM_FIELDS * prev), jnp.float32)
        p[f'cin_b{i+1}'] = 0.1 * jax.random.normal(next(keys), (u, 1), jnp.float32)
        prev = u
    dims = [NUM_FIELDS * EMBED_SIZE] + [HIDDEN_SIZE] * NUM_HIDDEN_LAYERS
    for i in range(NUM_HIDDEN_LAYERS):
        p[f'dnn_w{i}'] = 0.1 * jax.random.normal(
            next(keys), (dims[i + 1], dims[i]), jnp.float32)   # (out, in)
        p[f'dnn_b{i}'] = 0.1 * jax.random.normal(
            next(keys), (dims[i + 1], 1), jnp.float32)
    p['fc_w'] = 0.1 * jax.random.normal(next(keys), (OUT_DIM, FINAL_DIM),
                                        jnp.float32)
    p['fc_b'] = 0.1 * jax.random.normal(next(keys), (OUT_DIM, 1), jnp.float32)
    return p


if __name__ == "__main__":
    key = jax.random.PRNGKey(0)
    kp, kd = jax.random.split(key)
    params = init_params(kp)
    input_ids = jax.random.randint(kd, (BATCH, NUM_FIELDS), 0, INPUT_SIZE,
                                   dtype=jnp.int32)

    out = xdeepfm_forward(input_ids, params)
    out = jax.block_until_ready(out)

    ref = xdeepfm_ref(input_ids, params)
    assert out.shape == (BATCH,), out.shape
    if not jnp.allclose(out, ref, rtol=2e-3, atol=2e-3):
        raise AssertionError(f"mismatch: kernel={out}, ref={ref}")

    print("KERNEL_OK")
</pallas_src>

<mosaic_0001>
module attributes {stable_mosaic.version = 11 : i64} {
  func.func @xdeepfm_kernel(%arg0: i32, %arg1: memref<8x256xf32, #tpu.memory_space<vmem>>, %arg2: memref<8x256xf32, #tpu.memory_space<vmem>>, %arg3: memref<8x256xf32, #tpu.memory_space<vmem>>, %arg4: memref<24x64xbf16, #tpu.memory_space<vmem>>, %arg5: memref<384x64xbf16, #tpu.memory_space<vmem>>, %arg6: memref<16x128xf32, #tpu.memory_space<vmem>>, %arg7: memref<8x1xf32, #tpu.memory_space<vmem>>) attributes {dimension_semantics = [#tpu.dimension_semantics<parallel>], iteration_bounds = array<i64: 4>, scalar_prefetch = 0 : i64, scratch_operands = 0 : i64, tpu.core_type = #tpu.core_type<tc>, window_params = [{transform_indices = @transform_0, window_bounds = array<i64: 8, 256>}, {transform_indices = @transform_1, window_bounds = array<i64: 8, 256>}, {pipeline_mode = #tpu.pipeline_mode<synchronous>, transform_indices = @transform_2, window_bounds = array<i64: 8, 256>}, {pipeline_mode = #tpu.pipeline_mode<synchronous>, transform_indices = @transform_3, window_bounds = array<i64: 24, 64>}, {pipeline_mode = #tpu.pipeline_mode<synchronous>, transform_indices = @transform_4, window_bounds = array<i64: 384, 64>}, {pipeline_mode = #tpu.pipeline_mode<synchronous>, transform_indices = @transform_5, window_bounds = array<i64: 16, 128>}, {transform_indices = @transform_6, window_bounds = array<i64: 8, 1>}]} {
    %c0 = arith.constant 0 : index
    %c0_0 = arith.constant 0 : index
    %0 = vector.load %arg1[%c0, %c0_0] : memref<8x256xf32, #tpu.memory_space<vmem>>, vector<8x256xf32>
    %c0_1 = arith.constant 0 : index
    %c0_2 = arith.constant 0 : index
    %1 = vector.load %arg3[%c0_1, %c0_2] : memref<8x256xf32, #tpu.memory_space<vmem>>, vector<8x256xf32>
    %c0_3 = arith.constant 0 : index
    %c0_4 = arith.constant 0 : index
    %2 = vector.load %arg4[%c0_3, %c0_4] : memref<24x64xbf16, #tpu.memory_space<vmem>>, vector<24x64xbf16>
    %c0_5 = arith.constant 0 : index
    %c0_6 = arith.constant 0 : index
    %3 = vector.load %arg6[%c0_5, %c0_6] : memref<16x128xf32, #tpu.memory_space<vmem>>, vector<16x128xf32>
    %cst = arith.constant 0.000000e+00 : f32
    %4 = vector.broadcast %cst : f32 to vector<1x256xf32>
    %5 = vector.shape_cast %0 : vector<8x256xf32> to vector<8x1x256xf32>
    %6 = vector.shape_cast %0 : vector<8x256xf32> to vector<1x8x256xf32>
    %7 = vector.broadcast %5 : vector<8x1x256xf32> to vector<8x8x256xf32>
    %8 = vector.broadcast %6 : vector<1x8x256xf32> to vector<8x8x256xf32>
    %9 = arith.mulf %7, %8 : vector<8x8x256xf32>
    %10 = vector.shape_cast %9 : vector<8x8x256xf32> to vector<64x256xf32>
    %11 = vector.extract_strided_slice %2 {offsets = [0, 0], sizes = [8, 64], strides = [1, 1]} : vector<24x64xbf16> to vector<8x64xbf16>
    %12 = arith.truncf %10 : vector<64x256xf32> to vector<64x256xbf16>
    %cst_7 = arith.constant dense<0.000000e+00> : vector<8x256xf32>
    %13 = tpu.matmul %11, %12, %cst_7 {dimension_numbers = #tpu.dot_dimension_numbers<[1], [0], [0], [1], [0, 0, 1, 1], [], []>} : vector<8x64xbf16>, vector<64x256xbf16>, vector<8x256xf32> -> vector<8x256xf32>
    %14 = vector.extract_strided_slice %3 {offsets = [8, 0], sizes = [8, 1], strides = [1, 1]} : vector<16x128xf32> to vector<8x1xf32>
    %15 = vector.broadcast %14 : vector<8x1xf32> to vector<8x256xf32>
    %16 = arith.addf %13, %15 : vector<8x256xf32>
    %cst_8 = arith.constant 0.000000e+00 : f32
    %17 = vector.broadcast %cst_8 : f32 to vector<8x256xf32>
    %18 = arith.maximumf %16, %17 : vector<8x256xf32>
    %19 = vector.extract_strided_slice %3 {offsets = [8, 3], sizes = [8, 1], strides = [1, 1]} : vector<16x128xf32> to vector<8x1xf32>
    %20 = vector.broadcast %19 : vector<8x1xf32> to vector<8x256xf32>
    %21 = arith.mulf %18, %20 : vector<8x256xf32>
    %cst_9 = arith.constant dense<0.000000e+00> : vector<256xf32>
    %22 = vector.multi_reduction <add>, %21, %cst_9 [0] : vector<8x256xf32> to vector<256xf32>
    %23 = vector.shape_cast %22 : vector<256xf32> to vector<1x256xf32>
    %24 = arith.addf %4, %23 : vector<1x256xf32>
    %25 = vector.shape_cast %0 : vector<8x256xf32> to vector<8x1x256xf32>
    %26 = vector.shape_cast %18 : vector<8x256xf32> to vector<1x8x256xf32>
    %27 = vector.broadcast %25 : vector<8x1x256xf32> to vector<8x8x256xf32>
    %28 = vector.broadcast %26 : vector<1x8x256xf32> to vector<8x8x256xf32>
    %29 = arith.mulf %27, %28 : vector<8x8x256xf32>
    %30 = vector.shape_cast %29 : vector<8x8x256xf32> to vector<64x256xf32>
    %31 = vector.extract_strided_slice %2 {offsets = [8, 0], sizes = [8, 64], strides = [1, 1]} : vector<24x64xbf16> to vector<8x64xbf16>
    %32 = arith.truncf %30 : vector<64x256xf32> to vector<64x256xbf16>
    %cst_10 = arith.constant dense<0.000000e+00> : vector<8x256xf32>
    %33 = tpu.matmul %31, %32, %cst_10 {dimension_numbers = #tpu.dot_dimension_numbers<[1], [0], [0], [1], [0, 0, 1, 1], [], []>} : vector<8x64xbf16>, vector<64x256xbf16>, vector<8x256xf32> -> vector<8x256xf32>
    %34 = vector.extract_strided_slice %3 {offsets = [8, 1], sizes = [8, 1], strides = [1, 1]} : vector<16x128xf32> to vector<8x1xf32>
    %35 = vector.broadcast %34 : vector<8x1xf32> to vector<8x256xf32>
    %36 = arith.addf %33, %35 : vector<8x256xf32>
    %cst_11 = arith.constant 0.000000e+00 : f32
    %37 = vector.broadcast %cst_11 : f32 to vector<8x256xf32>
    %38 = arith.maximumf %36, %37 : vector<8x256xf32>
    %39 = vector.extract_strided_slice %3 {offsets = [8, 4], sizes = [8, 1], strides = [1, 1]} : vector<16x128xf32> to vector<8x1xf32>
    %40 = vector.broadcast %39 : vector<8x1xf32> to vector<8x256xf32>
    %41 = arith.mulf %38, %40 : vector<8x256xf32>
    %cst_12 = arith.constant dense<0.000000e+00> : vector<256xf32>
    %42 = vector.multi_reduction <add>, %41, %cst_12 [0] : vector<8x256xf32> to vector<256xf32>
    %43 = vector.shape_cast %42 : vector<256xf32> to vector<1x256xf32>
    %44 = arith.addf %24, %43 : vector<1x256xf32>
    %45 = vector.shape_cast %0 : vector<8x256xf32> to vector<8x1x256xf32>
    %46 = vector.shape_cast %38 : vector<8x256xf32> to vector<1x8x256xf32>
    %47 = vector.broadcast %45 : vector<8x1x256xf32> to vector<8x8x256xf32>
    %48 = vector.broadcast %46 : vector<1x8x256xf32> to vector<8x8x256xf32>
    %49 = arith.mulf %47, %48 : vector<8x8x256xf32>
    %50 = vector.shape_cast %49 : vector<8x8x256xf32> to vector<64x256xf32>
    %51 = vector.extract_strided_slice %2 {offsets = [16, 0], sizes = [8, 64], strides = [1, 1]} : vector<24x64xbf16> to vector<8x64xbf16>
    %52 = arith.truncf %50 : vector<64x256xf32> to vector<64x256xbf16>
    %cst_13 = arith.constant dense<0.000000e+00> : vector<8x256xf32>
    %53 = tpu.matmul %51, %52, %cst_13 {dimension_numbers = #tpu.dot_dimension_numbers<[1], [0], [0], [1], [0, 0, 1, 1], [], []>} : vector<8x64xbf16>, vector<64x256xbf16>, vector<8x256xf32> -> vector<8x256xf32>
    %54 = vector.extract_strided_slice %3 {offsets = [8, 2], sizes = [8, 1], strides = [1, 1]} : vector<16x128xf32> to vector<8x1xf32>
    %55 = vector.broadcast %54 : vector<8x1xf32> to vector<8x256xf32>
    %56 = arith.addf %53, %55 : vector<8x256xf32>
    %cst_14 = arith.constant 0.000000e+00 : f32
    %57 = vector.broadcast %cst_14 : f32 to vector<8x256xf32>
    %58 = arith.maximumf %56, %57 : vector<8x256xf32>
    %59 = vector.extract_strided_slice %3 {offsets = [8, 5], sizes = [8, 1], strides = [1, 1]} : vector<16x128xf32> to vector<8x1xf32>
    %60 = vector.broadcast %59 : vector<8x1xf32> to vector<8x256xf32>
    %61 = arith.mulf %58, %60 : vector<8x256xf32>
    %cst_15 = arith.constant dense<0.000000e+00> : vector<256xf32>
    %62 = vector.multi_reduction <add>, %61, %cst_15 [0] : vector<8x256xf32> to vector<256xf32>
    %63 = vector.shape_cast %62 : vector<256xf32> to vector<1x256xf32>
    %64 = arith.addf %44, %63 : vector<1x256xf32>
    %65 = vector.broadcast %64 : vector<1x256xf32> to vector<8x256xf32>
    %66 = arith.mulf %1, %65 : vector<8x256xf32>
    %cst_16 = arith.constant dense<0.000000e+00> : vector<8xf32>
    %67 = vector.multi_reduction <add>, %66, %cst_16 [1] : vector<8x256xf32> to vector<8xf32>
    %68 = vector.shape_cast %67 : vector<8xf32> to vector<8x1xf32>
    %c0_17 = arith.constant 0 : index
    %c0_18 = arith.constant 0 : index
    %69 = vector.load %arg5[%c0_17, %c0_18] : memref<384x64xbf16, #tpu.memory_space<vmem>>, vector<384x64xbf16>
    %c0_19 = arith.constant 0 : index
    %c0_20 = arith.constant 0 : index
    %70 = vector.load %arg2[%c0_19, %c0_20] : memref<8x256xf32, #tpu.memory_space<vmem>>, vector<8x256xf32>
    %71 = vector.extract_strided_slice %69 {offsets = [0, 0], sizes = [256, 64], strides = [1, 1]} : vector<384x64xbf16> to vector<256x64xbf16>
    %72 = vector.extract_strided_slice %3 {offsets = [0, 0], sizes = [1, 64], strides = [1, 1]} : vector<16x128xf32> to vector<1x64xf32>
    %73 = arith.truncf %70 : vector<8x256xf32> to vector<8x256xbf16>
    %cst_21 = arith.constant dense<0.000000e+00> : vector<8x64xf32>
    %74 = tpu.matmul %73, %71, %cst_21 {dimension_numbers = #tpu.dot_dimension_numbers<[1], [0], [0], [1], [0, 0, 1, 1], [], []>} : vector<8x256xbf16>, vector<256x64xbf16>, vector<8x64xf32> -> vector<8x64xf32>
    %75 = vector.broadcast %72 : vector<1x64xf32> to vector<8x64xf32>
    %76 = arith.addf %74, %75 : vector<8x64xf32>
    %cst_22 = arith.constant 0.000000e+00 : f32
    %77 = vector.broadcast %cst_22 : f32 to vector<8x64xf32>
    %78 = arith.maximumf %76, %77 : vector<8x64xf32>
    %79 = vector.extract_strided_slice %69 {offsets = [256, 0], sizes = [64, 64], strides = [1, 1]} : vector<384x64xbf16> to vector<64x64xbf16>
    %80 = vector.extract_strided_slice %3 {offsets = [1, 0], sizes = [1, 64], strides = [1, 1]} : vector<16x128xf32> to vector<1x64xf32>
    %81 = arith.truncf %78 : vector<8x64xf32> to vector<8x64xbf16>
    %cst_23 = arith.constant dense<0.000000e+00> : vector<8x64xf32>
    %82 = tpu.matmul %81, %79, %cst_23 {dimension_numbers = #tpu.dot_dimension_numbers<[1], [0], [0], [1], [0, 0, 1, 1], [], []>} : vector<8x64xbf16>, vector<64x64xbf16>, vector<8x64xf32> -> vector<8x64xf32>
    %83 = vector.broadcast %80 : vector<1x64xf32> to vector<8x64xf32>
    %84 = arith.addf %82, %83 : vector<8x64xf32>
    %cst_24 = arith.constant 0.000000e+00 : f32
    %85 = vector.broadcast %cst_24 : f32 to vector<8x64xf32>
    %86 = arith.maximumf %84, %85 : vector<8x64xf32>
    %87 = vector.extract_strided_slice %69 {offsets = [320, 0], sizes = [64, 64], strides = [1, 1]} : vector<384x64xbf16> to vector<64x64xbf16>
    %88 = vector.extract_strided_slice %3 {offsets = [2, 0], sizes = [1, 64], strides = [1, 1]} : vector<16x128xf32> to vector<1x64xf32>
    %89 = arith.truncf %86 : vector<8x64xf32> to vector<8x64xbf16>
    %cst_25 = arith.constant dense<0.000000e+00> : vector<8x64xf32>
    %90 = tpu.matmul %89, %87, %cst_25 {dimension_numbers = #tpu.dot_dimension_numbers<[1], [0], [0], [1], [0, 0, 1, 1], [], []>} : vector<8x64xbf16>, vector<64x64xbf16>, vector<8x64xf32> -> vector<8x64xf32>
    %91 = vector.broadcast %88 : vector<1x64xf32> to vector<8x64xf32>
    %92 = arith.addf %90, %91 : vector<8x64xf32>
    %cst_26 = arith.constant 0.000000e+00 : f32
    %93 = vector.broadcast %cst_26 : f32 to vector<8x64xf32>
    %94 = arith.maximumf %92, %93 : vector<8x64xf32>
    %95 = vector.extract_strided_slice %3 {offsets = [3, 0], sizes = [1, 64], strides = [1, 1]} : vector<16x128xf32> to vector<1x64xf32>
    %96 = vector.broadcast %95 : vector<1x64xf32> to vector<8x64xf32>
    %97 = arith.mulf %94, %96 : vector<8x64xf32>
    %cst_27 = arith.constant dense<0.000000e+00> : vector<8xf32>
    %98 = vector.multi_reduction <add>, %97, %cst_27 [1] : vector<8x64xf32> to vector<8xf32>
    %99 = vector.shape_cast %98 : vector<8xf32> to vector<8x1xf32>
    %100 = vector.extract_strided_slice %3 {offsets = [7, 0], sizes = [1, 1], strides = [1, 1]} : vector<16x128xf32> to vector<1x1xf32>
    %101 = arith.addf %68, %99 : vector<8x1xf32>
    %102 = vector.broadcast %100 : vector<1x1xf32> to vector<8x1xf32>
    %103 = arith.addf %101, %102 : vector<8x1xf32>
    %104 = arith.negf %103 : vector<8x1xf32>
    %105 = math.exp %104 : vector<8x1xf32>
    %cst_28 = arith.constant 1.000000e+00 : f32
    %106 = vector.broadcast %cst_28 : f32 to vector<8x1xf32>
    %107 = arith.addf %106, %105 : vector<8x1xf32>
    %108 = arith.divf %106, %107 : vector<8x1xf32>
    %c0_29 = arith.constant 0 : index
    %c0_30 = arith.constant 0 : index
    %109 = vector.load %arg7[%c0_29, %c0_30] : memref<8x1xf32, #tpu.memory_space<vmem>>, vector<8x1xf32>
    tpu.vector_store %arg7[%c0_29, %c0_30], %108 {strides = array<i32>} : memref<8x1xf32, #tpu.memory_space<vmem>>, vector<8x1xf32>,
    return
  }
  func.func @transform_0(%arg0: i32) -> (i32, i32) {
    %c0_i32 = arith.constant 0 : i32
    %c0_i32_0 = arith.constant 0 : i32
    return %c0_i32, %arg0 : i32, i32
  }
  func.func @transform_1(%arg0: i32) -> (i32, i32) {
    %c0_i32 = arith.constant 0 : i32
    %c0_i32_0 = arith.constant 0 : i32
    return %arg0, %c0_i32 : i32, i32
  }
  func.func @transform_2(%arg0: i32) -> (i32, i32) {
    %c0_i32 = arith.constant 0 : i32
    %c0_i32_0 = arith.constant 0 : i32
    %c0_i32_1 = arith.constant 0 : i32
    return %c0_i32, %c0_i32_0 : i32, i32
  }
  func.func @transform_3(%arg0: i32) -> (i32, i32) {
    %c0_i32 = arith.constant 0 : i32
    %c0_i32_0 = arith.constant 0 : i32
    %c0_i32_1 = arith.constant 0 : i32
    return %c0_i32, %c0_i32_0 : i32, i32
  }
  func.func @transform_4(%arg0: i32) -> (i32, i32) {
    %c0_i32 = arith.constant 0 : i32
    %c0_i32_0 = arith.constant 0 : i32
    %c0_i32_1 = arith.constant 0 : i32
    return %c0_i32, %c0_i32_0 : i32, i32
  }
  func.func @transform_5(%arg0: i32) -> (i32, i32) {
    %c0_i32 = arith.constant 0 : i32
    %c0_i32_0 = arith.constant 0 : i32
    %c0_i32_1 = arith.constant 0 : i32
    return %c0_i32, %c0_i32_0 : i32, i32
  }
  func.func @transform_6(%arg0: i32) -> (i32, i32) {
    %c0_i32 = arith.constant 0 : i32
    %c0_i32_0 = arith.constant 0 : i32
    return %arg0, %c0_i32 : i32, i32
  }
}

</mosaic_0001>

<llo_original>
// kernel: tpu_custom_call.1
$region0: #{tpu_custom_call.1}
  #allocation0 [shape = 'u32[]', space=smem, size = 0x4, offset = 0x4, fixed_abs, tag = 'smem constant byte address 0x4 - core index']
  #allocation1 [shape = 'u32[144,128]{1,0:T(1,128)}', space=vmem, size = 0x12000, scoped, tag = 'internal scratch']
  %s0 = inlined_call_operand.vmem [shape: f32[8,1024], index: 0, kind: input, shape index: {}]
  %s1 = inlined_call_operand.vmem [shape: f32[32,256], index: 1, kind: input, shape index: {}]
  %s2 = inlined_call_operand.vmem [shape: f32[8,256], index: 2, kind: input, shape index: {}]
  %s3 = inlined_call_operand.vmem [shape: bf16[24,64], index: 3, kind: input, shape index: {}]
  %s4 = inlined_call_operand.vmem [shape: bf16[384,64], index: 4, kind: input, shape index: {}]
  %s5 = inlined_call_operand.vmem [shape: f32[16,128], index: 5, kind: input, shape index: {}]
  %s6 = inlined_call_operand.vmem [shape: f32[32,1], index: 6, kind: output, shape index: {}]
  %s7 = sld [smem:[#allocation0]]
  $region57: #{tpu_custom_call.1} parent=0
    _
  %s9 = ssub.s32 1, %s7
  %s10 = scalar_select 0, %s9, %s7
  loop: start=0, step=1, limit=6
  $region2: #{tpu_custom_call.1} parent=0 // loop_pre_header
    _
  $region3: #{tpu_custom_call.1} parent=0 // loop_header
    %s12 = sphi 0, %s16
    %p13 = scmp.ge.s32.totalorder %s12, 6
    %s22 = sphi 0, %s24
    %s25 = sphi 0, %s22
    %s26 = sphi 0, %s25
    %s42 = sphi 0, %s26
    %s48 = sphi 0, %s50
    %s51 = sphi 0, %s48
    %s52 = sphi 0, %s51
    %s68 = sphi 0, %s52
    %s72 = sphi 0, %s72
    %s74 = sphi 0, %s72
    %s75 = sphi 0, %s74
    %s89 = sphi 0, %s75
    %s93 = sphi 0, %s93
    %s95 = sphi 0, %s93
    %s96 = sphi 0, %s95
    %s110 = sphi 0, %s96
    %s114 = sphi 0, %s114
    %s116 = sphi 0, %s114
    %s117 = sphi 0, %s116
    %s131 = sphi 0, %s117
    %s135 = sphi 0, %s135
    %s137 = sphi 0, %s135
    %s138 = sphi 0, %s137
    %s152 = sphi 0, %s138
    %s158 = sphi 0, %s160
    %s161 = sphi 0, %s158
    %s162 = sphi 0, %s161
    %s178 = sphi 0, %s162
  $region4: #{tpu_custom_call.1} parent=0 // loop_header_branch
    %15 = sbr.rel (%p13) target = $region8
  $region5: #{tpu_custom_call.1} parent=0 // loop_body
    %s17 = ssub.s32 %s12, 1
    %s18 = ssub.s32 %s12, 2
    %s19 = sadd.s32 %s12, 1
    %s20 = ssub.s32 %s12, %s19
    %p21 = scmp.eq.s32.totalorder %s20, 0
    %s23 = sadd.s32 %s22, 1
    %s24 = scalar_select %p21, %s22, %s23
    %p27 = pneg %p21
    %p28 = scmp.eq.s32.totalorder %s12, 3
    %p29 = por %p27, %p28
    %p30 = scmp.ne.s32.totalorder %s22, %s25
    %p31 = scmp.eq.s32.totalorder %s12, 0
    %p32 = por %p30, %p31
    %p33 = scmp.ne.s32.totalorder %s22, %s25
    %p34 = scmp.eq.s32.totalorder %s17, 3
    %p35 = por %p33, %p34
    %p36 = scmp.ne.s32.totalorder %s25, %s26
    %p37 = scmp.eq.s32.totalorder %s17, 0
    %p38 = por %p36, %p37
    %p39 = scmp.ne.s32.totalorder %s25, %s26
    %p40 = scmp.eq.s32.totalorder %s18, 3
    %p41 = por %p39, %p40
    %p43 = scmp.ne.s32.totalorder %s26, %s42
    %p44 = scmp.eq.s32.totalorder %s18, 0
    %p45 = por %p43, %p44
    %s46 = ssub.s32 %s12, %s19
    %p47 = scmp.eq.s32.totalorder %s46, 0
    %s49 = sadd.s32 %s48, 1
    %s50 = scalar_select %p47, %s48, %s49
    %p53 = pneg %p47
    %p54 = scmp.eq.s32.totalorder %s12, 3
    %p55 = por %p53, %p54
    %p56 = scmp.ne.s32.totalorder %s48, %s51
    %p57 = scmp.eq.s32.totalorder %s12, 0
    %p58 = por %p56, %p57
    %p59 = scmp.ne.s32.totalorder %s48, %s51
    %p60 = scmp.eq.s32.totalorder %s17, 3
    %p61 = por %p59, %p60
    %p62 = scmp.ne.s32.totalorder %s51, %s52
    %p63 = scmp.eq.s32.totalorder %s17, 0
    %p64 = por %p62, %p63
    %p65 = scmp.ne.s32.totalorder %s51, %s52
    %p66 = scmp.eq.s32.totalorder %s18, 3
    %p67 = por %p65, %p66
    %p69 = scmp.ne.s32.totalorder %s52, %s68
    %p70 = scmp.eq.s32.totalorder %s18, 0
    %p71 = por %p69, %p70
    %s73 = sadd.s32 %s72, 1
    %p76 = scmp.eq.s32.totalorder %s12, 3
    %p77 = scmp.ne.s32.totalorder %s72, %s74
    %p78 = scmp.eq.s32.totalorder %s12, 0
    %p79 = por %p77, %p78
    %p80 = scmp.ne.s32.totalorder %s72, %s74
    %p81 = scmp.eq.s32.totalorder %s17, 3
    %p82 = por %p80, %p81
    %p83 = scmp.ne.s32.totalorder %s74, %s75
    %p84 = scmp.eq.s32.totalorder %s17, 0
    %p85 = por %p83, %p84
    %p86 = scmp.ne.s32.totalorder %s74, %s75
    %p87 = scmp.eq.s32.totalorder %s18, 3
    %p88 = por %p86, %p87
    %p90 = scmp.ne.s32.totalorder %s75, %s89
    %p91 = scmp.eq.s32.totalorder %s18, 0
    %p92 = por %p90, %p91
    %s94 = sadd.s32 %s93, 1
    %p97 = scmp.eq.s32.totalorder %s12, 3
    %p98 = scmp.ne.s32.totalorder %s93, %s95
    %p99 = scmp.eq.s32.totalorder %s12, 0
    %p100 = por %p98, %p99
    %p101 = scmp.ne.s32.totalorder %s93, %s95
    %p102 = scmp.eq.s32.totalorder %s17, 3
    %p103 = por %p101, %p102
    %p104 = scmp.ne.s32.totalorder %s95, %s96
    %p105 = scmp.eq.s32.totalorder %s17, 0
    %p106 = por %p104, %p105
    %p107 = scmp.ne.s32.totalorder %s95, %s96
    %p108 = scmp.eq.s32.totalorder %s18, 3
    %p109 = por %p107, %p108
    %p111 = scmp.ne.s32.totalorder %s96, %s110
    %p112 = scmp.eq.s32.totalorder %s18, 0
    %p113 = por %p111, %p112
    %s115 = sadd.s32 %s114, 1
    %p118 = scmp.eq.s32.totalorder %s12, 3
    %p119 = scmp.ne.s32.totalorder %s114, %s116
    %p120 = scmp.eq.s32.totalorder %s12, 0
    %p121 = por %p119, %p120
    %p122 = scmp.ne.s32.totalorder %s114, %s116
    %p123 = scmp.eq.s32.totalorder %s17, 3
    %p124 = por %p122, %p123
    %p125 = scmp.ne.s32.totalorder %s116, %s117
    %p126 = scmp.eq.s32.totalorder %s17, 0
    %p127 = por %p125, %p126
    %p128 = scmp.ne.s32.totalorder %s116, %s117
    %p129 = scmp.eq.s32.totalorder %s18, 3
    %p130 = por %p128, %p129
    %p132 = scmp.ne.s32.totalorder %s117, %s131
    %p133 = scmp.eq.s32.totalorder %s18, 0
    %p134 = por %p132, %p133
    %s136 = sadd.s32 %s135, 1
    %p139 = scmp.eq.s32.totalorder %s12, 3
    %p140 = scmp.ne.s32.totalorder %s135, %s137
    %p141 = scmp.eq.s32.totalorder %s12, 0
    %p142 = por %p140, %p141
    %p143 = scmp.ne.s32.totalorder %s135, %s137
    %p144 = scmp.eq.s32.totalorder %s17, 3
    %p145 = por %p143, %p144
    %p146 = scmp.ne.s32.totalorder %s137, %s138
    %p147 = scmp.eq.s32.totalorder %s17, 0
    %p148 = por %p146, %p147
    %p149 = scmp.ne.s32.totalorder %s137, %s138
    %p150 = scmp.eq.s32.totalorder %s18, 3
    %p151 = por %p149, %p150
    %p153 = scmp.ne.s32.totalorder %s138, %s152
    %p154 = scmp.eq.s32.totalorder %s18, 0
    %p155 = por %p153, %p154
    %s156 = ssub.s32 %s12, %s19
    %p157 = scmp.eq.s32.totalorder %s156, 0
    %s159 = sadd.s32 %s158, 1
    %s160 = scalar_select %p157, %s158, %s159
    %p163 = pneg %p157
    %p164 = scmp.eq.s32.totalorder %s12, 3
    %p165 = por %p163, %p164
    %p166 = scmp.ne.s32.totalorder %s158, %s161
    %p167 = scmp.eq.s32.totalorder %s12, 0
    %p168 = por %p166, %p167
    %p169 = scmp.ne.s32.totalorder %s158, %s161
    %p170 = scmp.eq.s32.totalorder %s17, 3
    %p171 = por %p169, %p170
    %p172 = scmp.ne.s32.totalorder %s161, %s162
    %p173 = scmp.eq.s32.totalorder %s17, 0
    %p174 = por %p172, %p173
    %p175 = scmp.ne.s32.totalorder %s161, %s162
    %p176 = scmp.eq.s32.totalorder %s18, 3
    %p177 = por %p175, %p176
    %p179 = scmp.ne.s32.totalorder %s162, %s178
    %p180 = scmp.eq.s32.totalorder %s18, 0
    %p181 = por %p179, %p180
    %p182 = scmp.le.s32.totalorder 1, %s12
    %p183 = scmp.lt.s32.totalorder %s12, 5
    %p184 = pnand %p182, %p183
    %p185 = pneg %p184
    // Predicated region
    $region9: #{tpu_custom_call.1} parent=5 // pred_check
      _
    $region10: #{tpu_custom_call.1} parent=5 // pred_check_branch
      %187 = sbr.rel (%p184) target = $region12
    $region11: #{tpu_custom_call.1} parent=5 // pred_region
      %s188 = ssub.s32 %s12, 1
      // Predicated region
      $region13: #{tpu_custom_call.1} parent=11 // pred_check
        %p189 = pneg %p85
      $region14: #{tpu_custom_call.1} parent=11 // pred_check_branch
        %191 = sbr.rel (%p189) target = $region16
      $region15: #{tpu_custom_call.1} parent=11 // pred_region
        _
      $region16: #{tpu_custom_call.1} parent=11 // pred_fallthru
        _
      // Predicated region
      $region17: #{tpu_custom_call.1} parent=11 // pred_check
        %p192 = pneg %p106
      $region18: #{tpu_custom_call.1} parent=11 // pred_check_branch
        %194 = sbr.rel (%p192) target = $region20
      $region19: #{tpu_custom_call.1} parent=11 // pred_region
        _
      $region20: #{tpu_custom_call.1} parent=11 // pred_fallthru
        _
      // Predicated region
      $region21: #{tpu_custom_call.1} parent=11 // pred_check
        %p195 = pneg %p127
      $region22: #{tpu_custom_call.1} parent=11 // pred_check_branch
        %197 = sbr.rel (%p195) target = $region24
      $region23: #{tpu_custom_call.1} parent=11 // pred_region
        _
      $region24: #{tpu_custom_call.1} parent=11 // pred_fallthru
        _
      // Predicated region
      $region25: #{tpu_custom_call.1} parent=11 // pred_check
        %p198 = pneg %p148
      $region26: #{tpu_custom_call.1} parent=11 // pred_check_branch
        %200 = sbr.rel (%p198) target = $region28
      $region27: #{tpu_custom_call.1} parent=11 // pred_region
        _
      $region28: #{tpu_custom_call.1} parent=11 // pred_fallthru
        _
    $region12: #{tpu_custom_call.1} parent=5 // pred_fallthru
      _
    %p201 = scmp.lt.s32.totalorder %s12, 4
    // Predicated region
    $region29: #{tpu_custom_call.1} parent=5 // pred_check
      %p202 = pneg %p201
    $region30: #{tpu_custom_call.1} parent=5 // pred_check_branch
      %204 = sbr.rel (%p202) target = $region32
    $region31: #{tpu_custom_call.1} parent=5 // pred_region
      // Predicated region
      $region33: #{tpu_custom_call.1} parent=31 // pred_check
        %p205 = pneg %p32
      $region34: #{tpu_custom_call.1} parent=31 // pred_check_branch
        %207 = sbr.rel (%p205) target = $region36
      $region35: #{tpu_custom_call.1} parent=31 // pred_region
        %s208 = smul.u32 2, %s12
        %p209 = scmp.lt.s32.totalorder %s208, 7
        %s210 = scalar_select %p209, %s208, 7
        %s211 = smul.addr %s210, 8
        %s212 = scalar_lea.vmem %s0, %s211
        %s213 = smul.u32 2, %s12
      $region36: #{tpu_custom_call.1} parent=31 // pred_fallthru
        _
      // Predicated region
      $region37: #{tpu_custom_call.1} parent=31 // pred_check
        %p214 = pneg %p58
      $region38: #{tpu_custom_call.1} parent=31 // pred_check_branch
        %216 = sbr.rel (%p214) target = $region40
      $region39: #{tpu_custom_call.1} parent=31 // pred_region
        %p217 = scmp.lt.s32.totalorder %s12, 3
        %s218 = scalar_select %p217, %s12, 3
        %s219 = smul.addr %s218, 2
        %s220 = smul.addr %s219, 8
        %s221 = scalar_lea.vmem %s1, %s220
      $region40: #{tpu_custom_call.1} parent=31 // pred_fallthru
        _
    $region32: #{tpu_custom_call.1} parent=5 // pred_fallthru
      _
    %p222 = scmp.le.s32.totalorder 1, %s12
    %p223 = scmp.lt.s32.totalorder %s12, 5
    %p224 = pnand %p222, %p223
    %p225 = pneg %p224
    // Predicated region
    $region41: #{tpu_custom_call.1} parent=5 // pred_check
      _
    $region42: #{tpu_custom_call.1} parent=5 // pred_check_branch
      %227 = sbr.rel (%p224) target = $region44
    $region43: #{tpu_custom_call.1} parent=5 // pred_region
      %s228 = ssub.s32 %s12, 1
      %s229 = smul.u32 2, %s17
      %p230 = scmp.lt.s32.totalorder %s229, 7
      %s231 = scalar_select %p230, %s229, 7
      %s232 = smul.addr %s231, 8
      %s233 = scalar_lea.vmem %s0, %s232
      %p234 = pneg %p38
      %p235 = pneg %p35
      %p236 = scmp.lt.s32.totalorder %s17, 3
      %s237 = scalar_select %p236, %s17, 3
      %s238 = smul.addr %s237, 2
      %s239 = smul.addr %s238, 8
      %s240 = scalar_lea.vmem %s1, %s239
      %p241 = pneg %p64
      %p242 = pneg %p61
      %p243 = pneg %p85
      %p244 = pneg %p82
      %p245 = pneg %p106
      %p246 = pneg %p103
      %p247 = pneg %p127
      %p248 = pneg %p124
      %p249 = pneg %p148
      %p250 = pneg %p145
      %p251 = pneg %p174
      %p252 = pneg %p171
      %p253 = scmp.lt.s32.totalorder %s17, 3
      %s254 = scalar_select %p253, %s17, 3
      %s255 = smul.addr %s254, 8
      %s256 = scalar_lea.vmem %s6, %s255
      %s257 = smul.u32 2, %s17
      %p258 = scmp.lt.s32.totalorder %s257, 7
      %s259 = scalar_select %p258, %s257, 7
      %s260 = smul.addr %s259, 8
      %s261 = scalar_lea.vmem %s0, %s260
      %s262 = smul.u32 2, %s17
      %p263 = scmp.lt.s32.totalorder %s17, 3
      %s264 = scalar_select %p263, %s17, 3
      %s265 = smul.addr %s264, 2
      %s266 = smul.addr %s265, 8
      %s267 = scalar_lea.vmem %s1, %s266
      %p268 = scmp.lt.s32.totalorder %s17, 3
      %s269 = scalar_select %p268, %s17, 3
      %s270 = smul.addr %s269, 8
      %s271 = scalar_lea.vmem %s6, %s270
      %v273 = vld [vmem:[%s261] sm:$0xff]
      %v274 = vld [vmem:[%s261 + $0x8] sm:$0xff]
      %v275 = vld [vmem:[%s2] sm:$0xff]
      %v276 = vld [vmem:[%s2 + $0x8] sm:$0xff]
      %v277 = vld [vmem:[%s3] sm:$0xf]
      %v278 = vld [vmem:[%s3 + $0x4] sm:$0xf]
      %v279 = vld [vmem:[%s3 + $0x8] sm:$0xf]
      %v280 = vld [vmem:[%s5] sm:$0xff]
      %v281 = vld [vmem:[%s5 + $0x8] sm:$0xff]
      %v284 = vcombine.low %v273, %v274
      %v285 = vcombine.high %v273, %v274
      %v287 = vunpack.c.l.s4 1966171168
      %v288 = vunpack.c.0.s8 %v287
      %v289 = vlaneseq
      %v290 = vshrl.u32 %v289, 7
      %v291 = vsub.s32 %v288, %v290
      %v292 = vrot.slane %v284, %v291
      %v294 = vunpack.c.l.s4 1966171168
      %v295 = vunpack.c.0.s8 %v294
      %v296 = vlaneseq
      %v297 = vshrl.u32 %v296, 7
      %v298 = vsub.s32 %v295, %v297
      %v299 = vrot.slane %v285, %v298
      %v300 = vcombine.high %v292, %v292
      %v301 = vcombine.high %v299, %v299
      %v303 = vunpack.c.l.s4 1966171168
      %v304 = vunpack.c.0.s8 %v303
      %v305 = vlaneseq
      %v306 = vshrl.u32 %v305, 7
      %v307 = vsub.s32 %v304, %v306
      %v308 = vrot.slane %v292, %v307
      %v310 = vunpack.c.l.s4 1966171168
      %v311 = vunpack.c.0.s8 %v310
      %v312 = vlaneseq
      %v313 = vshrl.u32 %v312, 7
      %v314 = vsub.s32 %v311, %v313
      %v315 = vrot.slane %v299, %v314
      %v317 = vunpack.c.l.s4 1966171168
      %v318 = vunpack.c.0.s8 %v317
      %v319 = vlaneseq
      %v320 = vshrl.u32 %v319, 7
      %v321 = vsub.s32 %v318, %v320
      %v322 = vrot.slane %v300, %v321
      %v324 = vunpack.c.l.s4 1966171168
      %v325 = vunpack.c.0.s8 %v324
      %v326 = vlaneseq
      %v327 = vshrl.u32 %v326, 7
      %v328 = vsub.s32 %v325, %v327
      %v329 = vrot.slane %v301, %v328
      %v330 = vcombine.high %v308, %v308
      %v331 = vcombine.high %v315, %v315
      %v332 = vcombine.high %v322, %v322
      %v333 = vcombine.high %v329, %v329
      %v334 = vlaneseq
      %v335 = vshrl.u32 %v334, 7
      %v336 = vsub.s32 0, %v335
      %v337 = vrot.slane %v308, %v336
      %v338 = vlaneseq
      %v339 = vshrl.u32 %v338, 7
      %v340 = vsub.s32 1, %v339
      %v341 = vrot.slane %v308, %v340
      %v342 = vlaneseq
      %v343 = vshrl.u32 %v342, 7
      %v344 = vsub.s32 0, %v343
      %v345 = vrot.slane %v322, %v344
      %v346 = vlaneseq
      %v347 = vshrl.u32 %v346, 7
      %v348 = vsub.s32 1, %v347
      %v349 = vrot.slane %v322, %v348
      %v350 = vlaneseq
      %v351 = vshrl.u32 %v350, 7
      %v352 = vsub.s32 0, %v351
      %v353 = vrot.slane %v330, %v352
      %v354 = vlaneseq
      %v355 = vshrl.u32 %v354, 7
      %v356 = vsub.s32 1, %v355
      %v357 = vrot.slane %v330, %v356
      %v358 = vlaneseq
      %v359 = vshrl.u32 %v358, 7
      %v360 = vsub.s32 0, %v359
      %v361 = vrot.slane %v332, %v360
      %v362 = vlaneseq
      %v363 = vshrl.u32 %v362, 7
      %v364 = vsub.s32 1, %v363
      %v365 = vrot.slane %v332, %v364
      %v366 = vlaneseq
      %v367 = vshrl.u32 %v366, 7
      %v368 = vsub.s32 0, %v367
      %v369 = vrot.slane %v315, %v368
      %v370 = vlaneseq
      %v371 = vshrl.u32 %v370, 7
      %v372 = vsub.s32 1, %v371
      %v373 = vrot.slane %v315, %v372
      %v374 = vlaneseq
      %v375 = vshrl.u32 %v374, 7
      %v376 = vsub.s32 0, %v375
      %v377 = vrot.slane %v329, %v376
      %v378 = vlaneseq
      %v379 = vshrl.u32 %v378, 7
      %v380 = vsub.s32 1, %v379
      %v381 = vrot.slane %v329, %v380
      %v382 = vlaneseq
      %v383 = vshrl.u32 %v382, 7
      %v384 = vsub.s32 0, %v383
      %v385 = vrot.slane %v331, %v384
      %v386 = vlaneseq
      %v387 = vshrl.u32 %v386, 7
      %v388 = vsub.s32 1, %v387
      %v389 = vrot.slane %v331, %v388
      %v390 = vlaneseq
      %v391 = vshrl.u32 %v390, 7
      %v392 = vsub.s32 0, %v391
      %v393 = vrot.slane %v333, %v392
      %v394 = vlaneseq
      %v395 = vshrl.u32 %v394, 7
      %v396 = vsub.s32 1, %v395
      %v397 = vrot.slane %v333, %v396
      %v414 = vmul.f32 %v337, %v273
      %v415 = vmul.f32 %v341, %v274
      %v416 = vmul.f32 %v345, %v273
      %v417 = vmul.f32 %v349, %v274
      %v418 = vmul.f32 %v353, %v273
      %v419 = vmul.f32 %v357, %v274
      %v420 = vmul.f32 %v361, %v273
      %v421 = vmul.f32 %v365, %v274
      %v422 = vmul.f32 %v369, %v273
      %v423 = vmul.f32 %v373, %v274
      %v424 = vmul.f32 %v377, %v273
      %v425 = vmul.f32 %v381, %v274
      %v426 = vmul.f32 %v385, %v273
      %v427 = vmul.f32 %v389, %v274
      %v428 = vmul.f32 %v393, %v273
      %v429 = vmul.f32 %v397, %v274
      %v430 = vpack.c.bf16 %v416, %v414
      %v431 = vpack.c.bf16 %v417, %v415
      %v432 = vpack.c.bf16 %v420, %v418
      %v433 = vpack.c.bf16 %v421, %v419
      %v434 = vpack.c.bf16 %v424, %v422
      %v435 = vpack.c.bf16 %v425, %v423
      %v436 = vpack.c.bf16 %v428, %v426
      %v437 = vpack.c.bf16 %v429, %v427
      %439 = vset.pattern.permute.xlu0 0
      %440 = vperm.xlu0 %439, %v281
      %v441 = vpop.permute.xlu0 %440
      %vm443 = vcmask 523264
      %v445 = vsel %vm443, %v277, 0
      %447 = vmatprep.subr.bf16.mxu0 %v431
      %448 = vmatpush1.bf16.msra.mxu0 %v430
      %449 = vmatprep.subr.bf16.mxu0 %v433
      %450 = vmatpush1.bf16.msra.mxu0 %v432
      %451 = vmatprep.subr.bf16.mxu0 %v435
      %452 = vmatpush1.bf16.msra.mxu0 %v434
      %453 = vmatprep.subr.bf16.mxu0 %v437
      %454 = vmatpush1.bf16.msra.mxu0 %v436
      %455 = vmatprep.subr.bf16.mxu0 0
      %456 = vmatpush1.bf16.msra.mxu0 0
      %457 = vmatprep.subr.bf16.mxu0 0
      %458 = vmatpush1.bf16.msra.mxu0 0
      %459 = vmatprep.subr.bf16.mxu0 0
      %460 = vmatpush1.bf16.msra.mxu0 0
      %461 = vmatprep.subr.bf16.mxu0 0
      %462 = vmatpush1.bf16.msra.mxu0 0
      %463 = vmatprep.subr.bf16.mxu0 0
      %464 = vmatpush1.bf16.msra.mxu0 0
      %465 = vmatprep.subr.bf16.mxu0 0
      %466 = vmatpush1.bf16.msra.mxu0 0
      %467 = vmatprep.subr.bf16.mxu0 0
      %468 = vmatpush1.bf16.msra.mxu0 0
      %469 = vmatprep.subr.bf16.mxu0 0
      %470 = vmatpush1.bf16.msra.mxu0 0
      %471 = vmatprep.subr.bf16.mxu0 0
      %472 = vmatpush1.bf16.msra.mxu0 0
      %473 = vmatprep.subr.bf16.mxu0 0
      %474 = vmatpush1.bf16.msra.mxu0 0
      %475 = vmatprep.subr.bf16.mxu0 0
      %476 = vmatpush1.bf16.msra.mxu0 0
      %477 = vmatprep.subr.bf16.mxu0 0
      %478 = vmatpush1.bf16.msra.mxu0 0
      %479 = vmatprep.mubr.bf16.mxu0 0
      %480 = vmatmul.mubr.bf16.gmra.mrb[0].mxu0 %v445
      %v481 = vpop.f32.mrb[0].mxu0
      %v482 = vadd.f32 %v441, %v481
      %v483 = vpop.f32.mrb[0].mxu0
      %v484 = vadd.f32 %v441, %v483
      %v485 = vpop.f32.mrb[0].mxu0
      %v486 = vpop.f32.mrb[0].mxu0
      %487 = vdwg.mxu0
      %v488 = vmax.f32 %v482, 0.0
      %v489 = vmax.f32 %v484, 0.0
      %490 = vset.pattern.permute.xlu0 3
      %491 = vperm.xlu0 %490, %v281
      %v492 = vpop.permute.xlu0 %491
      %v494 = vmul.f32 %v488, %v492
      %v495 = vmul.f32 %v489, %v492
      %v496 = vrot.slane %v494, 4
      %v497 = vadd.f32 %v494, %v496
      %v498 = vrot.slane %v497, 2
      %v499 = vadd.f32 %v497, %v498
      %v500 = vrot.slane %v499, 1
      %v501 = vadd.f32 %v499, %v500
      %v502 = vrot.slane %v495, 4
      %v503 = vadd.f32 %v495, %v502
      %v504 = vrot.slane %v503, 2
      %v505 = vadd.f32 %v503, %v504
      %v506 = vrot.slane %v505, 1
      %v507 = vadd.f32 %v505, %v506
      %v508 = vadd.f32 %v501, 0.0
      %v509 = vadd.f32 %v507, 0.0
      %v510 = vmul.f32 %v337, %v488
      %v511 = vmul.f32 %v341, %v489
      %v512 = vmul.f32 %v345, %v488
      %v513 = vmul.f32 %v349, %v489
      %v514 = vmul.f32 %v353, %v488
      %v515 = vmul.f32 %v357, %v489
      %v516 = vmul.f32 %v361, %v488
      %v517 = vmul.f32 %v365, %v489
      %v518 = vmul.f32 %v369, %v488
      %v519 = vmul.f32 %v373, %v489
      %v520 = vmul.f32 %v377, %v488
      %v521 = vmul.f32 %v381, %v489
      %v522 = vmul.f32 %v385, %v488
      %v523 = vmul.f32 %v389, %v489
      %v524 = vmul.f32 %v393, %v488
      %v525 = vmul.f32 %v397, %v489
      %v526 = vpack.c.bf16 %v512, %v510
      %v527 = vpack.c.bf16 %v513, %v511
      %v528 = vpack.c.bf16 %v516, %v514
      %v529 = vpack.c.bf16 %v517, %v515
      %v530 = vpack.c.bf16 %v520, %v518
      %v531 = vpack.c.bf16 %v521, %v519
      %v532 = vpack.c.bf16 %v524, %v522
      %v533 = vpack.c.bf16 %v525, %v523
      %534 = vset.pattern.permute.xlu0 1
      %535 = vperm.xlu0 %534, %v281
      %v536 = vpop.permute.xlu0 %535
      %v539 = vsel %vm443, %v278, 0
      %541 = vmatprep.subr.bf16.mxu0 %v527
      %542 = vmatpush1.bf16.msra.mxu0 %v526
      %543 = vmatprep.subr.bf16.mxu0 %v529
      %544 = vmatpush1.bf16.msra.mxu0 %v528
      %545 = vmatprep.subr.bf16.mxu0 %v531
      %546 = vmatpush1.bf16.msra.mxu0 %v530
      %547 = vmatprep.subr.bf16.mxu0 %v533
      %548 = vmatpush1.bf16.msra.mxu0 %v532
      %549 = vmatprep.subr.bf16.mxu0 0
      %550 = vmatpush1.bf16.msra.mxu0 0
      %551 = vmatprep.subr.bf16.mxu0 0
      %552 = vmatpush1.bf16.msra.mxu0 0
      %553 = vmatprep.subr.bf16.mxu0 0
      %554 = vmatpush1.bf16.msra.mxu0 0
      %555 = vmatprep.subr.bf16.mxu0 0
      %556 = vmatpush1.bf16.msra.mxu0 0
      %557 = vmatprep.subr.bf16.mxu0 0
      %558 = vmatpush1.bf16.msra.mxu0 0
      %559 = vmatprep.subr.bf16.mxu0 0
      %560 = vmatpush1.bf16.msra.mxu0 0
      %561 = vmatprep.subr.bf16.mxu0 0
      %562 = vmatpush1.bf16.msra.mxu0 0
      %563 = vmatprep.subr.bf16.mxu0 0
      %564 = vmatpush1.bf16.msra.mxu0 0
      %565 = vmatprep.subr.bf16.mxu0 0
      %566 = vmatpush1.bf16.msra.mxu0 0
      %567 = vmatprep.subr.bf16.mxu0 0
      %568 = vmatpush1.bf16.msra.mxu0 0
      %569 = vmatprep.subr.bf16.mxu0 0
      %570 = vmatpush1.bf16.msra.mxu0 0
      %571 = vmatprep.subr.bf16.mxu0 0
      %572 = vmatpush1.bf16.msra.mxu0 0
      %573 = vmatprep.mubr.bf16.mxu0 0
      %574 = vmatmul.mubr.bf16.gmra.mrb[0].mxu0 %v539
      %v575 = vpop.f32.mrb[0].mxu0
      %v576 = vadd.f32 %v536, %v575
      %v577 = vpop.f32.mrb[0].mxu0
      %v578 = vadd.f32 %v536, %v577
      %v579 = vpop.f32.mrb[0].mxu0
      %v580 = vpop.f32.mrb[0].mxu0
      %581 = vdwg.mxu0
      %v582 = vmax.f32 %v576, 0.0
      %v583 = vmax.f32 %v578, 0.0
      %584 = vset.pattern.permute.xlu0 4
      %585 = vperm.xlu0 %584, %v281
      %v586 = vpop.permute.xlu0 %585
      %v588 = vmul.f32 %v582, %v586
      %v589 = vmul.f32 %v583, %v586
      %v590 = vrot.slane %v588, 4
      %v591 = vadd.f32 %v588, %v590
      %v592 = vrot.slane %v591, 2
      %v593 = vadd.f32 %v591, %v592
      %v594 = vrot.slane %v593, 1
      %v595 = vadd.f32 %v593, %v594
      %v596 = vrot.slane %v589, 4
      %v597 = vadd.f32 %v589, %v596
      %v598 = vrot.slane %v597, 2
      %v599 = vadd.f32 %v597, %v598
      %v600 = vrot.slane %v599, 1
      %v601 = vadd.f32 %v599, %v600
      %v602 = vadd.f32 %v508, %v595
      %v603 = vadd.f32 %v509, %v601
      %v604 = vmul.f32 %v337, %v582
      %v605 = vmul.f32 %v341, %v583
      %v606 = vmul.f32 %v345, %v582
      %v607 = vmul.f32 %v349, %v583
      %v608 = vmul.f32 %v353, %v582
      %v609 = vmul.f32 %v357, %v583
      %v610 = vmul.f32 %v361, %v582
      %v611 = vmul.f32 %v365, %v583
      %v612 = vmul.f32 %v369, %v582
      %v613 = vmul.f32 %v373, %v583
      %v614 = vmul.f32 %v377, %v582
      %v615 = vmul.f32 %v381, %v583
      %v616 = vmul.f32 %v385, %v582
      %v617 = vmul.f32 %v389, %v583
      %v618 = vmul.f32 %v393, %v582
      %v619 = vmul.f32 %v397, %v583
      %v620 = vpack.c.bf16 %v606, %v604
      %v621 = vpack.c.bf16 %v607, %v605
      %v622 = vpack.c.bf16 %v610, %v608
      %v623 = vpack.c.bf16 %v611, %v609
      %v624 = vpack.c.bf16 %v614, %v612
      %v625 = vpack.c.bf16 %v615, %v613
      %v626 = vpack.c.bf16 %v618, %v616
      %v627 = vpack.c.bf16 %v619, %v617
      %628 = vset.pattern.permute.xlu0 2
      %629 = vperm.xlu0 %628, %v281
      %v630 = vpop.permute.xlu0 %629
      %v633 = vsel %vm443, %v279, 0
      %635 = vmatprep.subr.bf16.mxu0 %v621
      %636 = vmatpush1.bf16.msra.mxu0 %v620
      %637 = vmatprep.subr.bf16.mxu0 %v623
      %638 = vmatpush1.bf16.msra.mxu0 %v622
      %639 = vmatprep.subr.bf16.mxu0 %v625
      %640 = vmatpush1.bf16.msra.mxu0 %v624
      %641 = vmatprep.subr.bf16.mxu0 %v627
      %642 = vmatpush1.bf16.msra.mxu0 %v626
      %643 = vmatprep.subr.bf16.mxu0 0
      %644 = vmatpush1.bf16.msra.mxu0 0
      %645 = vmatprep.subr.bf16.mxu0 0
      %646 = vmatpush1.bf16.msra.mxu0 0
      %647 = vmatprep.subr.bf16.mxu0 0
      %648 = vmatpush1.bf16.msra.mxu0 0
      %649 = vmatprep.subr.bf16.mxu0 0
      %650 = vmatpush1.bf16.msra.mxu0 0
      %651 = vmatprep.subr.bf16.mxu0 0
      %652 = vmatpush1.bf16.msra.mxu0 0
      %653 = vmatprep.subr.bf16.mxu0 0
      %654 = vmatpush1.bf16.msra.mxu0 0
      %655 = vmatprep.subr.bf16.mxu0 0
      %656 = vmatpush1.bf16.msra.mxu0 0
      %657 = vmatprep.subr.bf16.mxu0 0
      %658 = vmatpush1.bf16.msra.mxu0 0
      %659 = vmatprep.subr.bf16.mxu0 0
      %660 = vmatpush1.bf16.msra.mxu0 0
      %661 = vmatprep.subr.bf16.mxu0 0
      %662 = vmatpush1.bf16.msra.mxu0 0
      %663 = vmatprep.subr.bf16.mxu0 0
      %664 = vmatpush1.bf16.msra.mxu0 0
      %665 = vmatprep.subr.bf16.mxu0 0
      %666 = vmatpush1.bf16.msra.mxu0 0
      %667 = vmatprep.mubr.bf16.mxu0 0
      %668 = vmatmul.mubr.bf16.gmra.mrb[0].mxu0 %v633
      %v669 = vpop.f32.mrb[0].mxu0
      %v670 = vadd.f32 %v630, %v669
      %v671 = vpop.f32.mrb[0].mxu0
      %v672 = vadd.f32 %v630, %v671
      %v673 = vpop.f32.mrb[0].mxu0
      %v674 = vpop.f32.mrb[0].mxu0
      %675 = vdwg.mxu0
      %v676 = vmax.f32 %v670, 0.0
      %v677 = vmax.f32 %v672, 0.0
      %678 = vset.pattern.permute.xlu0 5
      %679 = vperm.xlu0 %678, %v281
      %v680 = vpop.permute.xlu0 %679
      %v682 = vmul.f32 %v676, %v680
      %v683 = vmul.f32 %v677, %v680
      %v684 = vrot.slane %v682, 4
      %v685 = vadd.f32 %v682, %v684
      %v686 = vrot.slane %v685, 2
      %v687 = vadd.f32 %v685, %v686
      %v688 = vrot.slane %v687, 1
      %v689 = vadd.f32 %v687, %v688
      %v690 = vrot.slane %v683, 4
      %v691 = vadd.f32 %v683, %v690
      %v692 = vrot.slane %v691, 2
      %v693 = vadd.f32 %v691, %v692
      %v694 = vrot.slane %v693, 1
      %v695 = vadd.f32 %v693, %v694
      %v696 = vadd.f32 %v602, %v689
      %v697 = vadd.f32 %v603, %v695
      %v698 = vmul.f32 %v275, %v696
      %v699 = vmul.f32 %v276, %v697
      %v700 = vadd.f32 %v698, %v699
      %701 = vadd.xlane.f32.xlu0 %v700
      %v702 = vpop.xlane.xlu0 %701
      %v703 = vld [vmem:[%s4] sm:$0xf]
      %v704 = vld [vmem:[%s4 + $0x4] sm:$0xf]
      %v705 = vld [vmem:[%s4 + $0x8] sm:$0xf]
      %v706 = vld [vmem:[%s4 + $0xc] sm:$0xf]
      %v707 = vld [vmem:[%s4 + $0x10] sm:$0xf]
      %v708 = vld [vmem:[%s4 + $0x14] sm:$0xf]
      %v709 = vld [vmem:[%s4 + $0x18] sm:$0xf]
      %v710 = vld [vmem:[%s4 + $0x1c] sm:$0xf]
      %v711 = vld [vmem:[%s4 + $0x20] sm:$0xf]
      %v712 = vld [vmem:[%s4 + $0x24] sm:$0xf]
      %v713 = vld [vmem:[%s4 + $0x28] sm:$0xf]
      %v714 = vld [vmem:[%s4 + $0x2c] sm:$0xf]
      %v715 = vld [vmem:[%s4 + $0x30] sm:$0xf]
      %v716 = vld [vmem:[%s4 + $0x34] sm:$0xf]
      %v717 = vld [vmem:[%s4 + $0x38] sm:$0xf]
      %v718 = vld [vmem:[%s4 + $0x3c] sm:$0xf]
      %v719 = vld [vmem:[%s4 + $0x40] sm:$0xf]
      %v720 = vld [vmem:[%s4 + $0x44] sm:$0xf]
      %v721 = vld [vmem:[%s4 + $0x48] sm:$0xf]
      %v722 = vld [vmem:[%s4 + $0x4c] sm:$0xf]
      %v723 = vld [vmem:[%s4 + $0x50] sm:$0xf]
      %v724 = vld [vmem:[%s4 + $0x54] sm:$0xf]
      %v725 = vld [vmem:[%s4 + $0x58] sm:$0xf]
      %v726 = vld [vmem:[%s4 + $0x5c] sm:$0xf]
      %v727 = vld [vmem:[%s4 + $0x60] sm:$0xf]
      %v728 = vld [vmem:[%s4 + $0x64] sm:$0xf]
      %v729 = vld [vmem:[%s4 + $0x68] sm:$0xf]
      %v730 = vld [vmem:[%s4 + $0x6c] sm:$0xf]
      %v731 = vld [vmem:[%s4 + $0x70] sm:$0xf]
      %v732 = vld [vmem:[%s4 + $0x74] sm:$0xf]
      %v733 = vld [vmem:[%s4 + $0x78] sm:$0xf]
      %v734 = vld [vmem:[%s4 + $0x7c] sm:$0xf]
      %v735 = vld [vmem:[%s4 + $0x80] sm:$0xf]
      %v736 = vld [vmem:[%s4 + $0x84] sm:$0xf]
      %v737 = vld [vmem:[%s4 + $0x88] sm:$0xf]
      %v738 = vld [vmem:[%s4 + $0x8c] sm:$0xf]
      %v739 = vld [vmem:[%s4 + $0x90] sm:$0xf]
      %v740 = vld [vmem:[%s4 + $0x94] sm:$0xf]
      %v741 = vld [vmem:[%s4 + $0x98] sm:$0xf]
      %v742 = vld [vmem:[%s4 + $0x9c] sm:$0xf]
      %v743 = vld [vmem:[%s4 + $0xa0] sm:$0xf]
      %v744 = vld [vmem:[%s4 + $0xa4] sm:$0xf]
      %v745 = vld [vmem:[%s4 + $0xa8] sm:$0xf]
      %v746 = vld [vmem:[%s4 + $0xac] sm:$0xf]
      %v747 = vld [vmem:[%s4 + $0xb0] sm:$0xf]
      %v748 = vld [vmem:[%s4 + $0xb4] sm:$0xf]
      %v749 = vld [vmem:[%s4 + $0xb8] sm:$0xf]
      %v750 = vld [vmem:[%s4 + $0xbc] sm:$0xf]
      %v751 = vld [vmem:[%s267] sm:$0xff]
      %v752 = vld [vmem:[%s267 + $0x8] sm:$0xff]
      %v753 = vpack.c.bf16 %v751, %v751
      %v754 = vpack.c.bf16 %v752, %v752
      %v755 = vlaneseq
      %v756 = vshrl.u32 %v755, 7
      %v757 = vsub.s32 0, %v756
      %v758 = vrot.slane %v280, %v757
      %v791 = vunpack.c.l.b16 %v703
      %v792 = vunpack.c.l.b16 %v704
      %v793 = vunpack.c.l.b16 %v705
      %v794 = vunpack.c.l.b16 %v706
      %v795 = vunpack.c.l.b16 %v707
      %v796 = vunpack.c.l.b16 %v708
      %v797 = vunpack.c.l.b16 %v709
      %v798 = vunpack.c.l.b16 %v710
      %v799 = vunpack.c.l.b16 %v711
      %v800 = vunpack.c.l.b16 %v712
      %v801 = vunpack.c.l.b16 %v713
      %v802 = vunpack.c.l.b16 %v714
      %v803 = vunpack.c.l.b16 %v715
      %v804 = vunpack.c.l.b16 %v716
      %v805 = vunpack.c.l.b16 %v717
      %v806 = vunpack.c.l.b16 %v718
      %v807 = vunpack.c.l.b16 %v719
      %v808 = vunpack.c.l.b16 %v720
      %v809 = vunpack.c.l.b16 %v721
      %v810 = vunpack.c.l.b16 %v722
      %v811 = vunpack.c.l.b16 %v723
      %v812 = vunpack.c.l.b16 %v724
      %v813 = vunpack.c.l.b16 %v725
      %v814 = vunpack.c.l.b16 %v726
      %v815 = vunpack.c.l.b16 %v727
      %v816 = vunpack.c.l.b16 %v728
      %v817 = vunpack.c.l.b16 %v729
      %v818 = vunpack.c.l.b16 %v730
      %v819 = vunpack.c.l.b16 %v731
      %v820 = vunpack.c.l.b16 %v732
      %v821 = vunpack.c.l.b16 %v733
      %v822 = vunpack.c.l.b16 %v734
      %v823 = vpack.c.b16 %v792, %v791
      %v824 = vpack.c.b16 %v794, %v793
      %v825 = vpack.c.b16 %v796, %v795
      %v826 = vpack.c.b16 %v798, %v797
      %v827 = vpack.c.b16 %v800, %v799
      %v828 = vpack.c.b16 %v802, %v801
      %v829 = vpack.c.b16 %v804, %v803
      %v830 = vpack.c.b16 %v806, %v805
      %v831 = vpack.c.b16 %v808, %v807
      %v832 = vpack.c.b16 %v810, %v809
      %v833 = vpack.c.b16 %v812, %v811
      %v834 = vpack.c.b16 %v814, %v813
      %v835 = vpack.c.b16 %v816, %v815
      %v836 = vpack.c.b16 %v818, %v817
      %v837 = vpack.c.b16 %v820, %v819
      %v838 = vpack.c.b16 %v822, %v821
      %855 = vmatprep.subr.bf16.mxu0 0
      %856 = vmatpush1.bf16.msra.mxu0 %v823
      %857 = vmatprep.subr.bf16.mxu0 0
      %858 = vmatpush1.bf16.msra.mxu0 %v824
      %859 = vmatprep.subr.bf16.mxu0 0
      %860 = vmatpush1.bf16.msra.mxu0 %v825
      %861 = vmatprep.subr.bf16.mxu0 0
      %862 = vmatpush1.bf16.msra.mxu0 %v826
      %863 = vmatprep.subr.bf16.mxu0 0
      %864 = vmatpush1.bf16.msra.mxu0 %v827
      %865 = vmatprep.subr.bf16.mxu0 0
      %866 = vmatpush1.bf16.msra.mxu0 %v828
      %867 = vmatprep.subr.bf16.mxu0 0
      %868 = vmatpush1.bf16.msra.mxu0 %v829
      %869 = vmatprep.subr.bf16.mxu0 0
      %870 = vmatpush1.bf16.msra.mxu0 %v830
      %871 = vmatprep.subr.bf16.mxu0 0
      %872 = vmatpush1.bf16.msra.mxu0 %v831
      %873 = vmatprep.subr.bf16.mxu0 0
      %874 = vmatpush1.bf16.msra.mxu0 %v832
      %875 = vmatprep.subr.bf16.mxu0 0
      %876 = vmatpush1.bf16.msra.mxu0 %v833
      %877 = vmatprep.subr.bf16.mxu0 0
      %878 = vmatpush1.bf16.msra.mxu0 %v834
      %879 = vmatprep.subr.bf16.mxu0 0
      %880 = vmatpush1.bf16.msra.mxu0 %v835
      %881 = vmatprep.subr.bf16.mxu0 0
      %882 = vmatpush1.bf16.msra.mxu0 %v836
      %883 = vmatprep.subr.bf16.mxu0 0
      %884 = vmatpush1.bf16.msra.mxu0 %v837
      %885 = vmatprep.subr.bf16.mxu0 0
      %886 = vmatpush1.bf16.msra.mxu0 %v838
      %887 = vmatprep.mubr.bf16.mxu0 %v754
      %888 = vmatmul.mubr.bf16.gmra.mrb[0].mxu0 %v753
      %v889 = vpop.f32.mrb[0].mxu0
      %v890 = vadd.f32 %v758, %v889
      %v891 = vpop.f32.mrb[0].mxu0
      %v892 = vpop.f32.mrb[0].mxu0
      %v893 = vpop.f32.mrb[0].mxu0
      %894 = vdwg.mxu0
      %v895 = vmax.f32 %v890, 0.0
      %v896 = vpack.c.bf16 %v895, %v895
      %v897 = vlaneseq
      %v898 = vshrl.u32 %v897, 7
      %v899 = vsub.s32 1, %v898
      %v900 = vrot.slane %v280, %v899
      %v909 = vunpack.c.l.b16 %v735
      %v910 = vunpack.c.l.b16 %v736
      %v911 = vunpack.c.l.b16 %v737
      %v912 = vunpack.c.l.b16 %v738
      %v913 = vunpack.c.l.b16 %v739
      %v914 = vunpack.c.l.b16 %v740
      %v915 = vunpack.c.l.b16 %v741
      %v916 = vunpack.c.l.b16 %v742
      %v917 = vpack.c.b16 %v910, %v909
      %v918 = vpack.c.b16 %v912, %v911
      %v919 = vpack.c.b16 %v914, %v913
      %v920 = vpack.c.b16 %v916, %v915
      %v926 = vsel %vm443, %v896, 0
      %928 = vmatprep.subr.bf16.mxu0 0
      %929 = vmatpush1.bf16.msra.mxu0 %v917
      %930 = vmatprep.subr.bf16.mxu0 0
      %931 = vmatpush1.bf16.msra.mxu0 %v918
      %932 = vmatprep.subr.bf16.mxu0 0
      %933 = vmatpush1.bf16.msra.mxu0 %v919
      %934 = vmatprep.subr.bf16.mxu0 0
      %935 = vmatpush1.bf16.msra.mxu0 %v920
      %936 = vmatprep.subr.bf16.mxu0 0
      %937 = vmatpush1.bf16.msra.mxu0 0
      %938 = vmatprep.subr.bf16.mxu0 0
      %939 = vmatpush1.bf16.msra.mxu0 0
      %940 = vmatprep.subr.bf16.mxu0 0
      %941 = vmatpush1.bf16.msra.mxu0 0
      %942 = vmatprep.subr.bf16.mxu0 0
      %943 = vmatpush1.bf16.msra.mxu0 0
      %944 = vmatprep.subr.bf16.mxu0 0
      %945 = vmatpush1.bf16.msra.mxu0 0
      %946 = vmatprep.subr.bf16.mxu0 0
      %947 = vmatpush1.bf16.msra.mxu0 0
      %948 = vmatprep.subr.bf16.mxu0 0
      %949 = vmatpush1.bf16.msra.mxu0 0
      %950 = vmatprep.subr.bf16.mxu0 0
      %951 = vmatpush1.bf16.msra.mxu0 0
      %952 = vmatprep.subr.bf16.mxu0 0
      %953 = vmatpush1.bf16.msra.mxu0 0
      %954 = vmatprep.subr.bf16.mxu0 0
      %955 = vmatpush1.bf16.msra.mxu0 0
      %956 = vmatprep.subr.bf16.mxu0 0
      %957 = vmatpush1.bf16.msra.mxu0 0
      %958 = vmatprep.subr.bf16.mxu0 0
      %959 = vmatpush1.bf16.msra.mxu0 0
      %960 = vmatprep.mubr.bf16.mxu0 0
      %961 = vmatmul.mubr.bf16.gmra.mrb[0].mxu0 %v926
      %v962 = vpop.f32.mrb[0].mxu0
      %v963 = vadd.f32 %v900, %v962
      %v964 = vpop.f32.mrb[0].mxu0
      %v965 = vpop.f32.mrb[0].mxu0
      %v966 = vpop.f32.mrb[0].mxu0
      %967 = vdwg.mxu0
      %v968 = vmax.f32 %v963, 0.0
      %v969 = vpack.c.bf16 %v968, %v968
      %v970 = vlaneseq
      %v971 = vshrl.u32 %v970, 7
      %v972 = vsub.s32 2, %v971
      %v973 = vrot.slane %v280, %v972
      %v982 = vunpack.c.l.b16 %v743
      %v983 = vunpack.c.l.b16 %v744
      %v984 = vunpack.c.l.b16 %v745
      %v985 = vunpack.c.l.b16 %v746
      %v986 = vunpack.c.l.b16 %v747
      %v987 = vunpack.c.l.b16 %v748
      %v988 = vunpack.c.l.b16 %v749
      %v989 = vunpack.c.l.b16 %v750
      %v990 = vpack.c.b16 %v983, %v982
      %v991 = vpack.c.b16 %v985, %v984
      %v992 = vpack.c.b16 %v987, %v986
      %v993 = vpack.c.b16 %v989, %v988
      %v999 = vsel %vm443, %v969, 0
      %1001 = vmatprep.subr.bf16.mxu0 0
      %1002 = vmatpush1.bf16.msra.mxu0 %v990
      %1003 = vmatprep.subr.bf16.mxu0 0
      %1004 = vmatpush1.bf16.msra.mxu0 %v991
      %1005 = vmatprep.subr.bf16.mxu0 0
      %1006 = vmatpush1.bf16.msra.mxu0 %v992
      %1007 = vmatprep.subr.bf16.mxu0 0
      %1008 = vmatpush1.bf16.msra.mxu0 %v993
      %1009 = vmatprep.subr.bf16.mxu0 0
      %1010 = vmatpush1.bf16.msra.mxu0 0
      %1011 = vmatprep.subr.bf16.mxu0 0
      %1012 = vmatpush1.bf16.msra.mxu0 0
      %1013 = vmatprep.subr.bf16.mxu0 0
      %1014 = vmatpush1.bf16.msra.mxu0 0
      %1015 = vmatprep.subr.bf16.mxu0 0
      %1016 = vmatpush1.bf16.msra.mxu0 0
      %1017 = vmatprep.subr.bf16.mxu0 0
      %1018 = vmatpush1.bf16.msra.mxu0 0
      %1019 = vmatprep.subr.bf16.mxu0 0
      %1020 = vmatpush1.bf16.msra.mxu0 0
      %1021 = vmatprep.subr.bf16.mxu0 0
      %1022 = vmatpush1.bf16.msra.mxu0 0
      %1023 = vmatprep.subr.bf16.mxu0 0
      %1024 = vmatpush1.bf16.msra.mxu0 0
      %1025 = vmatprep.subr.bf16.mxu0 0
      %1026 = vmatpush1.bf16.msra.mxu0 0
      %1027 = vmatprep.subr.bf16.mxu0 0
      %1028 = vmatpush1.bf16.msra.mxu0 0
      %1029 = vmatprep.subr.bf16.mxu0 0
      %1030 = vmatpush1.bf16.msra.mxu0 0
      %1031 = vmatprep.subr.bf16.mxu0 0
      %1032 = vmatpush1.bf16.msra.mxu0 0
      %1033 = vmatprep.mubr.bf16.mxu0 0
      %1034 = vmatmul.mubr.bf16.gmra.mrb[0].mxu0 %v999
      %v1035 = vpop.f32.mrb[0].mxu0
      %v1036 = vadd.f32 %v973, %v1035
      %v1037 = vpop.f32.mrb[0].mxu0
      %v1038 = vpop.f32.mrb[0].mxu0
      %v1039 = vpop.f32.mrb[0].mxu0
      %1040 = vdwg.mxu0
      %v1041 = vmax.f32 %v1036, 0.0
      %v1042 = vlaneseq
      %v1043 = vshrl.u32 %v1042, 7
      %v1044 = vsub.s32 3, %v1043
      %v1045 = vrot.slane %v280, %v1044
      %v1046 = vmul.f32 %v1041, %v1045
      %v1047 = vsel %vm443, %v1046, 0.0
      %1048 = vadd.xlane.f32.xlu0 %v1047
      %v1049 = vpop.xlane.xlu0 %1048
      %v1050 = vadd.f32 %v702, %v1049
      %v1051 = vlaneseq
      %v1052 = vshrl.u32 %v1051, 7
      %v1053 = vsub.s32 7, %v1052
      %v1054 = vrot.slane %v280, %v1053
      %v1055 = vadd.f32 %v1050, %v1054
      %v1056 = vxor.u32 %v1055, 2147483648
      %v1057 = vmul.f32 %v1056, 1.442695
      %v1058 = vpow.pop %v1057
      %v1059 = vadd.f32 %v1058, 1.0
      %v1060 = vrcp.pop %v1059
      %v1061 = vmul.f32 1.0, %v1060
      %vm1062 = vcmask 7168
      %1063 = vst.msk [vmem:[%s271] sm:$0xff] %vm1062, %v1061
      %p1064 = scmp.lt.s32.totalorder %s17, 3
      %s1065 = scalar_select %p1064, %s17, 3
      %s1066 = smul.addr %s1065, 8
      %s1067 = scalar_lea.vmem %s6, %s1066
      // Predicated region
      $region45: #{tpu_custom_call.1} parent=43 // pred_check
        %p1068 = pneg %p171
      $region46: #{tpu_custom_call.1} parent=43 // pred_check_branch
        %1070 = sbr.rel (%p1068) target = $region48
      $region47: #{tpu_custom_call.1} parent=43 // pred_region
        _
      $region48: #{tpu_custom_call.1} parent=43 // pred_fallthru
        _
    $region44: #{tpu_custom_call.1} parent=5 // pred_fallthru
      _
    %p1071 = scmp.le.s32.totalorder 2, %s12
    // Predicated region
    $region49: #{tpu_custom_call.1} parent=5 // pred_check
      %p1072 = pneg %p1071
    $region50: #{tpu_custom_call.1} parent=5 // pred_check_branch
      %1074 = sbr.rel (%p1072) target = $region52
    $region51: #{tpu_custom_call.1} parent=5 // pred_region
      %s1075 = ssub.s32 %s12, 2
      // Predicated region
      $region53: #{tpu_custom_call.1} parent=51 // pred_check
        %p1076 = pneg %p177
      $region54: #{tpu_custom_call.1} parent=51 // pred_check_branch
        %1078 = sbr.rel (%p1076) target = $region56
      $region55: #{tpu_custom_call.1} parent=51 // pred_region
        %p1079 = scmp.lt.s32.totalorder %s18, 3
        %s1080 = scalar_select %p1079, %s18, 3
        %s1081 = smul.addr %s1080, 8
        %s1082 = scalar_lea.vmem %s6, %s1081
      $region56: #{tpu_custom_call.1} parent=51 // pred_fallthru
        _
    $region52: #{tpu_custom_call.1} parent=5 // pred_fallthru
      _
  $region6: #{tpu_custom_call.1} parent=0 // loop_footer
    %s16 = sadd.s32 1, %s12
  $region7: #{tpu_custom_call.1} parent=0 // loop_footer_branch
    %11 = sbr.rel target = $region3
  $region8: #{tpu_custom_call.1} parent=0 // loop_exit
    _

</llo_original>
